<compile_context>
chip_gen: v7x
topology: tpu7x:2x2x1
jax: 0.10.0
libtpu: 0.0.40
codegen_flags: <defaults>
</compile_context>

<pallas_src>
import numpy as np
import jax
import jax.numpy as jnp
from jax.experimental import pallas as pl
from jax.experimental.pallas import tpu as pltpu

# SingleLabelModel: single head, classes_dict {'thyroid': ['nodule', 'other']} -> 2 classes.
NUM_CLASSES = 2


def head_kernel(feat_ref, w_ref, b_ref, out_ref, pool_acc):
    # feat_ref: (TB, TS, C) bf16   backbone feature tile (channels-last, spatial tiled, zero-padded tail)
    # w_ref:    (C, KPAD)  f32     classifier weight * (1/S_true), class dim zero-padded to 128 lanes
    # b_ref:    (1, KPAD)  f32     classifier bias (padded)
    # out_ref:  (TB, KPAD) f32     padded logits (resident across the spatial grid axis)
    # pool_acc: (TB, C)    f32     running spatial sum (global-average-pool accumulator)
    si = pl.program_id(1)

    @pl.when(si == 0)
    def _():
        pool_acc[...] = jnp.zeros_like(pool_acc)

    # SelectAdaptivePool2d('avg'): accumulate the spatial sum in f32 (bf16 tiles upcast).
    # Zero-padded spatial rows contribute nothing; 1/S_true is folded into w_ref.
    pool_acc[...] += jnp.sum(feat_ref[...].astype(jnp.float32), axis=1)

    @pl.when(si == pl.num_programs(1) - 1)
    def _():
        # Dropout(drop_rate) is identity in eval mode.  Mean scale lives in w_ref already.
        logits = jnp.dot(pool_acc[...], w_ref[...],
                         preferred_element_type=jnp.float32) + b_ref[...]
        out_ref[...] = logits.astype(out_ref.dtype)


def _round_up(x, m):
    return ((x + m - 1) // m) * m


def _pick_batch_tile(n):
    """Multiple of 8 dividing n, capped at min(64, n // 2) so grid[0] >= 2 (v7x 2-TC sharding).
    Falls back to the full batch for small / awkward n (block_shape == full dim is always legal)."""
    if n < 16:
        return n
    cap = min(64, n // 2)
    best = None
    t = 8
    while t <= cap:
        if n % t == 0:
            best = t
        t += 8
    return best if best is not None else n


def single_label_heads(feats_nhwc, w, b, *, tb=None, ts=None,
                       vmem_limit_bytes=48 * 1024 * 1024,
                       tile_target_bytes=8 * 1024 * 1024):
    """SingleLabelModel head: global-avg-pool + Linear on the backbone feature map.

    feats_nhwc: (N, Hf, Wf, C) channels-last backbone feature map (bf16 or f32).
    w:          (C, num_classes) f32 classifier weight.
    b:          (num_classes,)   f32 classifier bias.
    Returns a list with one (N, num_classes) f32 logits array (matches `outs` of forward()).
    """
    n, hf, wf, c = feats_nhwc.shape
    s = hf * wf
    feats = feats_nhwc.reshape(n, s, c)        # contiguous view, no HBM transpose pass

    k = w.shape[1]
    kpad = max(128, _round_up(k, 128))         # lane-dense, unmasked output stores
    inv_s = 1.0 / float(s)                     # fold the mean scale into the weight
    w_p = jnp.pad(w.astype(jnp.float32) * inv_s, ((0, 0), (0, kpad - k)))
    b_p = jnp.pad(b.astype(jnp.float32).reshape(1, k), ((0, 0), (0, kpad - k)))

    # Batch tile.
    if tb is None:
        tb = _pick_batch_tile(n)
    assert n % tb == 0, (n, tb)

    # Sublane multiple by dtype packing: f32 -> 8, bf16 -> 16, int8/fp8 -> 32.
    itemsize = feats.dtype.itemsize
    sublane = {4: 8, 2: 16, 1: 32}.get(itemsize, 8)

    # Spatial tile: aim for ~tile_target_bytes per (double-buffered) feature block.
    if ts is None:
        bytes_per_spatial_row = max(1, tb * c * itemsize)
        ts = max(sublane, (tile_target_bytes // bytes_per_spatial_row) // sublane * sublane)
    ts = max(sublane, (ts // sublane) * sublane)
    ts = min(ts, _round_up(s, sublane))

    # Zero-pad the spatial axis up to a multiple of ts (exact: 1/S_true lives in w_p, so the
    # padded zero rows contribute nothing) instead of falling back to a VMEM-busting full-S block.
    s_pad = _round_up(s, ts)
    if s_pad != s:
        feats = jnp.pad(feats, ((0, 0), (0, s_pad - s), (0, 0)))

    grid = (n // tb, s_pad // ts)

    # HBM-bound cost hint so XLA schedules surrounding (backbone) ops to overlap this call.
    cost = pl.CostEstimate(
        flops=n * s_pad * c + 2 * n * c * kpad,
        transcendentals=0,
        bytes_accessed=n * s_pad * c * itemsize + c * kpad * 4 + kpad * 4 + n * kpad * 4,
    )

    packed = pl.pallas_call(
        head_kernel,
        out_shape=jax.ShapeDtypeStruct((n, kpad), jnp.float32),
        grid_spec=pltpu.PrefetchScalarGridSpec(
            num_scalar_prefetch=0,
            grid=grid,
            in_specs=[
                pl.BlockSpec((tb, ts, c), lambda bi, si: (bi, si, 0)),
                pl.BlockSpec((c, kpad), lambda bi, si: (0, 0)),
                pl.BlockSpec((1, kpad), lambda bi, si: (0, 0)),
            ],
            out_specs=pl.BlockSpec((tb, kpad), lambda bi, si: (bi, 0)),
            scratch_shapes=[pltpu.VMEM((tb, c), jnp.float32)],
        ),
        compiler_params=pltpu.CompilerParams(
            dimension_semantics=("parallel", "arbitrary"),
            vmem_limit_bytes=vmem_limit_bytes,
        ),
        cost_estimate=cost,
    )(feats, w_p, b_p)

    return [packed[:, :k]]   # SingleLabelModel.forward returns a list of head outputs


def reference_heads(feats_nhwc, w, b):
    """Plain-JAX reference of the same forward (for correctness check)."""
    n, hf, wf, c = feats_nhwc.shape
    pooled = jnp.mean(feats_nhwc.astype(jnp.float32).reshape(n, hf * wf, c), axis=1)
    return [pooled @ w.astype(jnp.float32) + b.astype(jnp.float32)]


if __name__ == "__main__":
    key = jax.random.PRNGKey(0)
    k_f, k_w = jax.random.split(key, 2)

    # Small deterministic example: model input x would be NCHW (2, 3, H, W); the external
    # backbone turns it into a channels-last bf16 feature map, which we stand in for directly
    # (the backbone itself is not re-implemented).  Hf = Wf = 7 (S = 49) deliberately exercises
    # the zero-padded spatial-tail path.
    batch = 2
    n_features = 32
    hf = wf = 7
    num_classes = NUM_CLASSES

    feats_nhwc = jax.random.normal(
        k_f, (batch, hf, wf, n_features), dtype=jnp.float32).astype(jnp.bfloat16)

    # ClassifierHead Linear params (kaiming-ish normal, zero bias).
    w = (jax.random.normal(k_w, (n_features, num_classes), dtype=jnp.float32)
         * jnp.sqrt(2.0 / n_features))
    b = jnp.zeros((num_classes,), dtype=jnp.float32)

    refs = reference_heads(feats_nhwc, w, b)

    # Case 1: forced small spatial tile (ts=16) so the multi-step pool-accumulation path AND the
    # zero-padded tail block (49 -> 64) are exercised.
    outs = single_label_heads(feats_nhwc, w, b, tb=batch, ts=16)
    outs = [jax.block_until_ready(o) for o in outs]
    assert len(outs) == 1
    assert outs[0].shape == (batch, num_classes), outs[0].shape
    np.testing.assert_allclose(np.asarray(outs[0]), np.asarray(refs[0]),
                               rtol=1e-2, atol=1e-2)

    # Case 2: default (auto) tile selection path.
    outs_auto = single_label_heads(feats_nhwc, w, b)
    outs_auto = [jax.block_until_ready(o) for o in outs_auto]
    np.testing.assert_allclose(np.asarray(outs_auto[0]), np.asarray(refs[0]),
                               rtol=1e-2, atol=1e-2)

    print("KERNEL_OK")
</pallas_src>

<mosaic_0001>
module attributes {stable_mosaic.version = 11 : i64} {
  func.func @head_kernel(%arg0: i32, %arg1: i32, %arg2: memref<2x16x32xbf16, #tpu.memory_space<vmem>>, %arg3: memref<32x128xf32, #tpu.memory_space<vmem>>, %arg4: memref<1x128xf32, #tpu.memory_space<vmem>>, %arg5: memref<2x128xf32, #tpu.memory_space<vmem>>, %arg6: memref<2x32xf32, #tpu.memory_space<vmem>>) attributes {dimension_semantics = [#tpu.dimension_semantics<parallel>, #tpu.dimension_semantics<arbitrary>], iteration_bounds = array<i64: 1, 4>, scalar_prefetch = 0 : i64, scratch_operands = 1 : i64, tpu.core_type = #tpu.core_type<tc>, window_params = [{transform_indices = @transform_0, window_bounds = array<i64: 2, 16, 32>}, {pipeline_mode = #tpu.pipeline_mode<synchronous>, transform_indices = @transform_1, window_bounds = array<i64: 32, 128>}, {pipeline_mode = #tpu.pipeline_mode<synchronous>, transform_indices = @transform_2, window_bounds = array<i64: 1, 128>}, {transform_indices = @transform_3, window_bounds = array<i64: 2, 128>}]} {
    %c0_i32 = arith.constant 0 : i32
    %0 = arith.cmpi eq, %arg1, %c0_i32 : i32
    %1 = arith.extui %0 : i1 to i32
    %c0_i32_0 = arith.constant 0 : i32
    %2 = arith.cmpi ne, %1, %c0_i32_0 : i32
    scf.if %2 {
      %cst_8 = arith.constant 0.000000e+00 : f32
      %12 = vector.broadcast %cst_8 : f32 to vector<2x32xf32>
      %c0_9 = arith.constant 0 : index
      %c0_10 = arith.constant 0 : index
      %13 = vector.load %arg6[%c0_9, %c0_10] : memref<2x32xf32, #tpu.memory_space<vmem>>, vector<2x32xf32>
      tpu.vector_store %arg6[%c0_9, %c0_10], %12 {strides = array<i32>} : memref<2x32xf32, #tpu.memory_space<vmem>>, vector<2x32xf32>,
    } else {
    }
    %c0 = arith.constant 0 : index
    %c0_1 = arith.constant 0 : index
    %3 = vector.load %arg6[%c0, %c0_1] : memref<2x32xf32, #tpu.memory_space<vmem>>, vector<2x32xf32>
    %c0_2 = arith.constant 0 : index
    %c0_3 = arith.constant 0 : index
    %c0_4 = arith.constant 0 : index
    %4 = vector.load %arg2[%c0_2, %c0_3, %c0_4] : memref<2x16x32xbf16, #tpu.memory_space<vmem>>, vector<2x16x32xbf16>
    %5 = arith.extf %4 : vector<2x16x32xbf16> to vector<2x16x32xf32>
    %cst = arith.constant dense<0.000000e+00> : vector<2x32xf32>
    %6 = vector.multi_reduction <add>, %5, %cst [1] : vector<2x16x32xf32> to vector<2x32xf32>
    %7 = arith.addf %3, %6 : vector<2x32xf32>
    %c0_5 = arith.constant 0 : index
    %c0_6 = arith.constant 0 : index
    %8 = vector.load %arg6[%c0_5, %c0_6] : memref<2x32xf32, #tpu.memory_space<vmem>>, vector<2x32xf32>
    tpu.vector_store %arg6[%c0_5, %c0_6], %7 {strides = array<i32>} : memref<2x32xf32, #tpu.memory_space<vmem>>, vector<2x32xf32>,
    %c3_i32 = arith.constant 3 : i32
    %9 = arith.cmpi eq, %arg1, %c3_i32 : i32
    %10 = arith.extui %9 : i1 to i32
    %c0_i32_7 = arith.constant 0 : i32
    %11 = arith.cmpi ne, %10, %c0_i32_7 : i32
    scf.if %11 {
      %c0_8 = arith.constant 0 : index
      %c0_9 = arith.constant 0 : index
      %12 = vector.load %arg6[%c0_8, %c0_9] : memref<2x32xf32, #tpu.memory_space<vmem>>, vector<2x32xf32>
      %c0_10 = arith.constant 0 : index
      %c0_11 = arith.constant 0 : index
      %13 = vector.load %arg3[%c0_10, %c0_11] : memref<32x128xf32, #tpu.memory_space<vmem>>, vector<32x128xf32>
      %cst_12 = arith.constant dense<0.000000e+00> : vector<2x128xf32>
      %14 = tpu.matmul %12, %13, %cst_12 {dimension_numbers = #tpu.dot_dimension_numbers<[1], [0], [0], [1], [0, 0, 1, 1], [], []>} : vector<2x32xf32>, vector<32x128xf32>, vector<2x128xf32> -> vector<2x128xf32>
      %c0_13 = arith.constant 0 : index
      %c0_14 = arith.constant 0 : index
      %15 = vector.load %arg4[%c0_13, %c0_14] : memref<1x128xf32, #tpu.memory_space<vmem>>, vector<1x128xf32>
      %16 = vector.broadcast %15 : vector<1x128xf32> to vector<2x128xf32>
      %17 = arith.addf %14, %16 : vector<2x128xf32>
      %c0_15 = arith.constant 0 : index
      %c0_16 = arith.constant 0 : index
      %18 = vector.load %arg5[%c0_15, %c0_16] : memref<2x128xf32, #tpu.memory_space<vmem>>, vector<2x128xf32>
      tpu.vector_store %arg5[%c0_15, %c0_16], %17 {strides = array<i32>} : memref<2x128xf32, #tpu.memory_space<vmem>>, vector<2x128xf32>,
    } else {
    }
    return
  }
  func.func @transform_0(%arg0: i32, %arg1: i32) -> (i32, i32, i32) {
    %c0_i32 = arith.constant 0 : i32
    %c0_i32_0 = arith.constant 0 : i32
    return %arg0, %arg1, %c0_i32 : i32, i32, i32
  }
  func.func @transform_1(%arg0: i32, %arg1: i32) -> (i32, i32) {
    %c0_i32 = arith.constant 0 : i32
    %c0_i32_0 = arith.constant 0 : i32
    %c0_i32_1 = arith.constant 0 : i32
    return %c0_i32, %c0_i32_0 : i32, i32
  }
  func.func @transform_2(%arg0: i32, %arg1: i32) -> (i32, i32) {
    %c0_i32 = arith.constant 0 : i32
    %c0_i32_0 = arith.constant 0 : i32
    %c0_i32_1 = arith.constant 0 : i32
    return %c0_i32, %c0_i32_0 : i32, i32
  }
  func.func @transform_3(%arg0: i32, %arg1: i32) -> (i32, i32) {
    %c0_i32 = arith.constant 0 : i32
    %c0_i32_0 = arith.constant 0 : i32
    return %arg0, %c0_i32 : i32, i32
  }
}

</mosaic_0001>

<llo_original>
// kernel: tpu_custom_call.1
$region0: #{tpu_custom_call.1}
  #allocation0 [shape = 'u32[]', space=smem, size = 0x4, offset = 0x4, fixed_abs, tag = 'smem constant byte address 0x4 - core index']
  #allocation1 [shape = 'u32[144,128]{1,0:T(1,128)}', space=vmem, size = 0x12000, scoped, tag = 'internal scratch']
  #allocation2 [shape = 'f32[2,32]{1,0:T(2,128)}', space=vmem, size = 0x400, scoped, tag = 'scratch operand']
  %s0 = inlined_call_operand.vmem [shape: bf16[2,64,32], index: 0, kind: input, shape index: {}]
  %s1 = inlined_call_operand.vmem [shape: f32[32,128], index: 1, kind: input, shape index: {}]
  %s2 = inlined_call_operand.vmem [shape: f32[1,128], index: 2, kind: input, shape index: {}]
  %s3 = inlined_call_operand.hbm [shape: f32[2,128], index: 3, kind: output, shape index: {}]
  %s4 = sld [smem:[#allocation0]]
  $region94: #{tpu_custom_call.1} parent=0
    _
  %s6 = ssub.s32 1, %s4
  %s7 = scalar_select 0, %s6, %s4
  $region1: #{tpu_custom_call.1} parent=0
    #allocation3 [shape = 'u8[16384]{0}', space=vmem, size = 0x4000, scoped, tag = 'input window, operand 0']
    #allocation4 [shape = 'u8[1024]{0}', space=vmem, size = 0x400, scoped, tag = 'output window, operand 0, single buffered']
    #allocation5 [shape = 's32[2]{0}', space=sflag, size = 0x8, scoped, tag = 'scoped memory for tpu_custom_call.1']
    %8 = vsyncpa [#allocation5], 0
    loop: start=0, step=1, limit=6
    $region2: #{tpu_custom_call.1} parent=1 // loop_pre_header
      _
    $region3: #{tpu_custom_call.1} parent=1 // loop_header
      %s10 = sphi 0, %s14
      %p11 = scmp.ge.s32.totalorder %s10, 6
      %s17 = sphi 0, %s29
      %s18 = sphi 0, %s25
      %s19 = sphi 0, %s17
      %s20 = sphi 0, %s18
      %s21 = sphi 0, %s19
      %s22 = sphi 0, %s20
      %s34 = sphi 0, %s36
      %s37 = sphi 0, %s34
      %s38 = sphi 0, %s37
      %s54 = sphi 0, %s38
      %s58 = sphi 0, %s58
      %s60 = sphi 0, %s58
      %s61 = sphi 0, %s60
      %s75 = sphi 0, %s61
      %s79 = sphi 0, %s79
      %s81 = sphi 0, %s79
      %s82 = sphi 0, %s81
      %s96 = sphi 0, %s82
      %s102 = sphi 0, %s104
      %s105 = sphi 0, %s102
      %s106 = sphi 0, %s105
      %s122 = sphi 0, %s106
    $region4: #{tpu_custom_call.1} parent=1 // loop_header_branch
      %13 = sbr.rel (%p11) target = $region8
    $region5: #{tpu_custom_call.1} parent=1 // loop_body
      %s15 = ssub.s32 %s10, 1
      %s16 = ssub.s32 %s10, 2
      %s23 = sadd.s32 1, %s18
      %p24 = scmp.ge.s32.totalorder %s23, 4
      %s25 = scalar_select %p24, 0, %s23
      %s26 = sadd.s32 1, %s17
      %s27 = scalar_select %p24, %s26, %s17
      %p28 = scmp.ge.s32.totalorder %s27, 1
      %s29 = scalar_select %p28, 0, %s27
      %s30 = ssub.s32 %s17, %s29
      %s31 = ssub.s32 %s18, %s25
      %s32 = sor.u32 %s30, %s31
      %p33 = scmp.eq.s32.totalorder %s32, 0
      %s35 = sadd.s32 %s34, 1
      %s36 = scalar_select %p33, %s34, %s35
      %p39 = pneg %p33
      %p40 = scmp.eq.s32.totalorder %s10, 3
      %p41 = por %p39, %p40
      %p42 = scmp.ne.s32.totalorder %s34, %s37
      %p43 = scmp.eq.s32.totalorder %s10, 0
      %p44 = por %p42, %p43
      %p45 = scmp.ne.s32.totalorder %s34, %s37
      %p46 = scmp.eq.s32.totalorder %s15, 3
      %p47 = por %p45, %p46
      %p48 = scmp.ne.s32.totalorder %s37, %s38
      %p49 = scmp.eq.s32.totalorder %s15, 0
      %p50 = por %p48, %p49
      %p51 = scmp.ne.s32.totalorder %s37, %s38
      %p52 = scmp.eq.s32.totalorder %s16, 3
      %p53 = por %p51, %p52
      %p55 = scmp.ne.s32.totalorder %s38, %s54
      %p56 = scmp.eq.s32.totalorder %s16, 0
      %p57 = por %p55, %p56
      %s59 = sadd.s32 %s58, 1
      %p62 = scmp.eq.s32.totalorder %s10, 3
      %p63 = scmp.ne.s32.totalorder %s58, %s60
      %p64 = scmp.eq.s32.totalorder %s10, 0
      %p65 = por %p63, %p64
      %p66 = scmp.ne.s32.totalorder %s58, %s60
      %p67 = scmp.eq.s32.totalorder %s15, 3
      %p68 = por %p66, %p67
      %p69 = scmp.ne.s32.totalorder %s60, %s61
      %p70 = scmp.eq.s32.totalorder %s15, 0
      %p71 = por %p69, %p70
      %p72 = scmp.ne.s32.totalorder %s60, %s61
      %p73 = scmp.eq.s32.totalorder %s16, 3
      %p74 = por %p72, %p73
      %p76 = scmp.ne.s32.totalorder %s61, %s75
      %p77 = scmp.eq.s32.totalorder %s16, 0
      %p78 = por %p76, %p77
      %s80 = sadd.s32 %s79, 1
      %p83 = scmp.eq.s32.totalorder %s10, 3
      %p84 = scmp.ne.s32.totalorder %s79, %s81
      %p85 = scmp.eq.s32.totalorder %s10, 0
      %p86 = por %p84, %p85
      %p87 = scmp.ne.s32.totalorder %s79, %s81
      %p88 = scmp.eq.s32.totalorder %s15, 3
      %p89 = por %p87, %p88
      %p90 = scmp.ne.s32.totalorder %s81, %s82
      %p91 = scmp.eq.s32.totalorder %s15, 0
      %p92 = por %p90, %p91
      %p93 = scmp.ne.s32.totalorder %s81, %s82
      %p94 = scmp.eq.s32.totalorder %s16, 3
      %p95 = por %p93, %p94
      %p97 = scmp.ne.s32.totalorder %s82, %s96
      %p98 = scmp.eq.s32.totalorder %s16, 0
      %p99 = por %p97, %p98
      %s100 = ssub.s32 %s17, %s29
      %p101 = scmp.eq.s32.totalorder %s100, 0
      %s103 = sadd.s32 %s102, 1
      %s104 = scalar_select %p101, %s102, %s103
      %p107 = pneg %p101
      %p108 = scmp.eq.s32.totalorder %s10, 3
      %p109 = por %p107, %p108
      %p110 = scmp.ne.s32.totalorder %s102, %s105
      %p111 = scmp.eq.s32.totalorder %s10, 0
      %p112 = por %p110, %p111
      %p113 = scmp.ne.s32.totalorder %s102, %s105
      %p114 = scmp.eq.s32.totalorder %s15, 3
      %p115 = por %p113, %p114
      %p116 = scmp.ne.s32.totalorder %s105, %s106
      %p117 = scmp.eq.s32.totalorder %s15, 0
      %p118 = por %p116, %p117
      %p119 = scmp.ne.s32.totalorder %s105, %s106
      %p120 = scmp.eq.s32.totalorder %s16, 3
      %p121 = por %p119, %p120
      %p123 = scmp.ne.s32.totalorder %s106, %s122
      %p124 = scmp.eq.s32.totalorder %s16, 0
      %p125 = por %p123, %p124
      %p126 = scmp.le.s32.totalorder 1, %s10
      %p127 = scmp.lt.s32.totalorder %s10, 5
      %p128 = pnand %p126, %p127
      %p129 = pneg %p128
      // Predicated region
      $region9: #{tpu_custom_call.1} parent=5 // pred_check
        _
      $region10: #{tpu_custom_call.1} parent=5 // pred_check_branch
        %131 = sbr.rel (%p128) target = $region12
      $region11: #{tpu_custom_call.1} parent=5 // pred_region
        %s132 = ssub.s32 %s10, 1
        // Predicated region
        $region13: #{tpu_custom_call.1} parent=11 // pred_check
          %p133 = pneg %p71
        $region14: #{tpu_custom_call.1} parent=11 // pred_check_branch
          %135 = sbr.rel (%p133) target = $region16
        $region15: #{tpu_custom_call.1} parent=11 // pred_region
          _
        $region16: #{tpu_custom_call.1} parent=11 // pred_fallthru
          _
        // Predicated region
        $region17: #{tpu_custom_call.1} parent=11 // pred_check
          %p136 = pneg %p92
        $region18: #{tpu_custom_call.1} parent=11 // pred_check_branch
          %138 = sbr.rel (%p136) target = $region20
        $region19: #{tpu_custom_call.1} parent=11 // pred_region
          _
        $region20: #{tpu_custom_call.1} parent=11 // pred_fallthru
          _
      $region12: #{tpu_custom_call.1} parent=5 // pred_fallthru
        _
      %p139 = scmp.lt.s32.totalorder %s10, 4
      // Predicated region
      $region21: #{tpu_custom_call.1} parent=5 // pred_check
        %p140 = pneg %p139
      $region22: #{tpu_custom_call.1} parent=5 // pred_check_branch
        %142 = sbr.rel (%p140) target = $region24
      $region23: #{tpu_custom_call.1} parent=5 // pred_region
        // Predicated region
        $region25: #{tpu_custom_call.1} parent=23 // pred_check
          %p143 = pneg %p44
        $region26: #{tpu_custom_call.1} parent=23 // pred_check_branch
          %145 = sbr.rel (%p143) target = $region28
        $region27: #{tpu_custom_call.1} parent=23 // pred_region
          %s146 = sand.u32 %s34, 1
          %s147 = sand.u32 %s34, 1
          %s148 = smul.addr %s147, 16
          %s149 = scalar_lea.vmem [#allocation3], %s148
          %s150 = smul.u32 2, %s17
          %s151 = smul.u32 2, %s18
          %s152 = smul.addr %s150, 8
          %s153 = sadd.s32 %s151, %s152
          %s154 = smul.addr %s153, 4
          %s155 = scalar_lea.vmem %s0, %s154
          // Predicated region
          $region29: #{tpu_custom_call.1} parent=27 // pred_check
            _
          $region30: #{tpu_custom_call.1} parent=27 // pred_check_branch
            %157 = sbr.rel (0) target = $region32
          $region31: #{tpu_custom_call.1} parent=27 // pred_region
            // Predicated region
            $region33: #{tpu_custom_call.1} parent=31 // pred_check
              _
            $region34: #{tpu_custom_call.1} parent=31 // pred_check_branch
              %159 = sbr.rel target = $region36
            $region35: #{tpu_custom_call.1} parent=31 // pred_region
              // Predicated region
              $region48: #{tpu_custom_call.1} parent=35 // pred_check
                _
              $region49: #{tpu_custom_call.1} parent=35 // pred_check_branch
                %180 = sbr.rel (0) target = $region51
              $region50: #{tpu_custom_call.1} parent=35 // pred_region
                loop: start=0, step=1, limit=1
                $region52: #{tpu_custom_call.1} parent=50 // loop_pre_header
                  _
                $region53: #{tpu_custom_call.1} parent=50 // loop_header
                  %s182 = sphi 0, %s186
                  %p183 = scmp.ge.s32.totalorder %s182, 1
                  %s187 = sphi %s155, %s155
                  %s188 = sphi %s149, %s149
                $region54: #{tpu_custom_call.1} parent=50 // loop_header_branch
                  %185 = sbr.rel (%p183) target = $region58
                $region55: #{tpu_custom_call.1} parent=50 // loop_body
                  _
                $region56: #{tpu_custom_call.1} parent=50 // loop_footer
                  %s186 = sadd.s32 1, %s182
                $region57: #{tpu_custom_call.1} parent=50 // loop_footer_branch
                  %181 = sbr.rel target = $region53
                $region58: #{tpu_custom_call.1} parent=50 // loop_exit
                  _
                loop: start=0, step=1, limit=1
                $region59: #{tpu_custom_call.1} parent=50 // loop_pre_header
                  _
                $region60: #{tpu_custom_call.1} parent=50 // loop_header
                  %s191 = sphi 0, %s195
                  %p192 = scmp.ge.s32.totalorder %s191, 1
                  %s196 = sphi %s155, %s155
                  %s197 = sphi %s149, %s149
                $region61: #{tpu_custom_call.1} parent=50 // loop_header_branch
                  %194 = sbr.rel (%p192) target = $region65
                $region62: #{tpu_custom_call.1} parent=50 // loop_body
                  %v198 = vld [vmem:[%s196] sm:$0xf]
                  %199 = vst [vmem:[%s197] sm:$0xf] %v198
                  %v200 = vld [vmem:[%s196 + $0x4] sm:$0xf]
                  %201 = vst [vmem:[%s197 + $0x4] sm:$0xf] %v200
                  %v202 = vld [vmem:[%s196 + $0x20] sm:$0xf]
                  %203 = vst [vmem:[%s197 + $0x8] sm:$0xf] %v202
                  %v204 = vld [vmem:[%s196 + $0x24] sm:$0xf]
                  %205 = vst [vmem:[%s197 + $0xc] sm:$0xf] %v204
                $region63: #{tpu_custom_call.1} parent=50 // loop_footer
                  %s195 = sadd.s32 1, %s191
                $region64: #{tpu_custom_call.1} parent=50 // loop_footer_branch
                  %190 = sbr.rel target = $region60
                $region65: #{tpu_custom_call.1} parent=50 // loop_exit
                  _
              $region51: #{tpu_custom_call.1} parent=35 // pred_fallthru
                _
            $region36: #{tpu_custom_call.1} parent=31 // pred_fallthru
              _
            // Predicated region
            $region37: #{tpu_custom_call.1} parent=31 // pred_check
              _
            $region38: #{tpu_custom_call.1} parent=31 // pred_check_branch
              %161 = sbr.rel (0) target = $region40
            $region39: #{tpu_custom_call.1} parent=31 // pred_region
              loop: start=0, step=1, limit=1
              $region41: #{tpu_custom_call.1} parent=39 // loop_pre_header
                _
              $region42: #{tpu_custom_call.1} parent=39 // loop_header
                %s164 = sphi 0, %s168
                %p165 = scmp.ge.s32.totalorder %s164, 1
                %s169 = sphi %s155, %s155
                %s170 = sphi %s149, %s149
              $region43: #{tpu_custom_call.1} parent=39 // loop_header_branch
                %167 = sbr.rel (%p165) target = $region47
              $region44: #{tpu_custom_call.1} parent=39 // loop_body
                %v171 = vld [vmem:[%s169] sm:$0xf]
                %172 = vst [vmem:[%s170] sm:$0xf] %v171
                %v173 = vld [vmem:[%s169 + $0x4] sm:$0xf]
                %174 = vst [vmem:[%s170 + $0x4] sm:$0xf] %v173
                %v175 = vld [vmem:[%s169 + $0x20] sm:$0xf]
                %176 = vst [vmem:[%s170 + $0x8] sm:$0xf] %v175
                %v177 = vld [vmem:[%s169 + $0x24] sm:$0xf]
                %178 = vst [vmem:[%s170 + $0xc] sm:$0xf] %v177
              $region45: #{tpu_custom_call.1} parent=39 // loop_footer
                %s168 = sadd.s32 1, %s164
              $region46: #{tpu_custom_call.1} parent=39 // loop_footer_branch
                %163 = sbr.rel target = $region42
              $region47: #{tpu_custom_call.1} parent=39 // loop_exit
                _
            $region40: #{tpu_custom_call.1} parent=31 // pred_fallthru
              _
          $region32: #{tpu_custom_call.1} parent=27 // pred_fallthru
            _
          %206 = vnop
        $region28: #{tpu_custom_call.1} parent=23 // pred_fallthru
          _
      $region24: #{tpu_custom_call.1} parent=5 // pred_fallthru
        _
      %p207 = scmp.le.s32.totalorder 1, %s10
      %p208 = scmp.lt.s32.totalorder %s10, 5
      %p209 = pnand %p207, %p208
      %p210 = pneg %p209
      // Predicated region
      $region66: #{tpu_custom_call.1} parent=5 // pred_check
        _
      $region67: #{tpu_custom_call.1} parent=5 // pred_check_branch
        %212 = sbr.rel (%p209) target = $region69
      $region68: #{tpu_custom_call.1} parent=5 // pred_region
        %s213 = ssub.s32 %s10, 1
        %s214 = sand.u32 %s37, 1
        %s215 = sand.u32 %s37, 1
        %s216 = smul.addr %s215, 16
        %s217 = scalar_lea.vmem [#allocation3], %s216
        // Predicated region
        $region70: #{tpu_custom_call.1} parent=68 // pred_check
          %p218 = pneg %p50
        $region71: #{tpu_custom_call.1} parent=68 // pred_check_branch
          %220 = sbr.rel (%p218) target = $region73
        $region72: #{tpu_custom_call.1} parent=68 // pred_region
          _
        $region73: #{tpu_custom_call.1} parent=68 // pred_fallthru
          _
        %s221 = sand.u32 %s37, 1
        %s222 = sand.u32 %s37, 1
        %s223 = smul.addr %s222, 16
        %s224 = scalar_lea.vmem [#allocation3], %s223
        %p225 = pneg %p50
        %p226 = pneg %p47
        %p227 = pneg %p71
        %p228 = pneg %p68
        %p229 = pneg %p92
        %p230 = pneg %p89
        %p231 = pneg %p118
        %p232 = pneg %p115
        %s233 = smul.u32 2, %s19
        %s234 = smul.u32 2, %s20
        %p235 = scmp.eq.s32.totalorder %s20, 0
        // Predicated region
        $region74: #{tpu_custom_call.1} parent=68 // pred_check
          %p236 = pneg %p235
        $region75: #{tpu_custom_call.1} parent=68 // pred_check_branch
          %238 = sbr.rel (%p236) target = $region77
        $region76: #{tpu_custom_call.1} parent=68 // pred_region
          %vm239 = vcmask 254976
          %240 = vst.msk [vmem:[#allocation2] sm:$0x3] %vm239, 0.0
        $region77: #{tpu_custom_call.1} parent=68 // pred_fallthru
          _
        %v241 = vld [vmem:[#allocation2] sm:$0x3]
        %v242 = vld [vmem:[%s217] sm:$0xf]
        %v243 = vld [vmem:[%s217 + $0x4] sm:$0xf]
        %v244 = vld [vmem:[%s217 + $0x8] sm:$0xf]
        %v245 = vld [vmem:[%s217 + $0xc] sm:$0xf]
        %v246 = vunpack.c.l.bf16 %v242
        %v247 = vunpack.c.l.bf16 %v243
        %v248 = vunpack.c.l.bf16 %v244
        %v249 = vunpack.c.l.bf16 %v245
        %vm250 = vcmask 261120
        %v251 = vsel %vm250, %v246, 0.0
        %v252 = vsel %vm250, %v247, 0.0
        %v253 = vadd.f32 %v251, %v252
        %v254 = vrot.slane %v253, 4
        %v255 = vadd.f32 %v253, %v254
        %v256 = vrot.slane %v255, 2
        %v257 = vadd.f32 %v255, %v256
        %v258 = vrot.slane %v257, 1
        %v259 = vadd.f32 %v257, %v258
        %v260 = vsel %vm250, %v248, 0.0
        %v261 = vsel %vm250, %v249, 0.0
        %v262 = vadd.f32 %v260, %v261
        %v263 = vrot.slane %v262, 4
        %v264 = vadd.f32 %v262, %v263
        %v265 = vrot.slane %v264, 2
        %v266 = vadd.f32 %v264, %v265
        %v267 = vrot.slane %v266, 1
        %v268 = vadd.f32 %v266, %v267
        %vm271 = vcmask 1041409
        %v272 = vsel %vm271, %v268, %v259
        %v274 = vadd.f32 %v241, %v272
        %vm275 = vcmask 254976
        %276 = vst.msk [vmem:[#allocation2] sm:$0x3] %vm275, %v274
        %p277 = scmp.eq.s32.totalorder %s20, 3
        // Predicated region
        $region78: #{tpu_custom_call.1} parent=68 // pred_check
          %p278 = pneg %p277
        $region79: #{tpu_custom_call.1} parent=68 // pred_check_branch
          %280 = sbr.rel (%p278) target = $region81
        $region80: #{tpu_custom_call.1} parent=68 // pred_region
          %v281 = vld [vmem:[#allocation2] sm:$0x3]
          %v282 = vld [vmem:[%s1] sm:$0xff]
          %v283 = vld [vmem:[%s1 + $0x8] sm:$0xff]
          %v284 = vld [vmem:[%s1 + $0x10] sm:$0xff]
          %v285 = vld [vmem:[%s1 + $0x18] sm:$0xff]
          %v286 = vld [vmem:[%s2] sm:$0x1]
          %v288 = vlaneseq
          %v289 = vshrl.u32 %v288, 7
          %v290 = vsub.s32 0, %v289
          %v291 = vrot.slane %v286, %v290
          %v294 = vsel %vm250, %v281, 0
          %296 = vmatprep.subr.mxu0 0.0
          %297 = vmatpush1.msra.mxu0 %v282
          %298 = vmatprep.subr.mxu0 0.0
          %299 = vmatpush1.msra.mxu0 %v283
          %300 = vmatprep.subr.mxu0 0.0
          %301 = vmatpush1.msra.mxu0 %v284
          %302 = vmatprep.subr.mxu0 0.0
          %303 = vmatpush1.msra.mxu0 %v285
          %304 = vmatprep.subr.mxu0 0.0
          %305 = vmatpush1.msra.mxu0 0.0
          %306 = vmatprep.subr.mxu0 0.0
          %307 = vmatpush1.msra.mxu0 0.0
          %308 = vmatprep.subr.mxu0 0.0
          %309 = vmatpush1.msra.mxu0 0.0
          %310 = vmatprep.subr.mxu0 0.0
          %311 = vmatpush1.msra.mxu0 0.0
          %312 = vmatprep.subr.mxu0 0.0
          %313 = vmatpush1.msra.mxu0 0.0
          %314 = vmatprep.subr.mxu0 0.0
          %315 = vmatpush1.msra.mxu0 0.0
          %316 = vmatprep.subr.mxu0 0.0
          %317 = vmatpush1.msra.mxu0 0.0
          %318 = vmatprep.subr.mxu0 0.0
          %319 = vmatpush1.msra.mxu0 0.0
          %320 = vmatprep.subr.mxu0 0.0
          %321 = vmatpush1.msra.mxu0 0.0
          %322 = vmatprep.subr.mxu0 0.0
          %323 = vmatpush1.msra.mxu0 0.0
          %324 = vmatprep.subr.mxu0 0.0
          %325 = vmatpush1.msra.mxu0 0.0
          %326 = vmatprep.subr.mxu0 0.0
          %327 = vmatpush1.msra.mxu0 0.0
          %328 = vmatprep.subr.mxu0 0.0
          %329 = vmatpush1.msra.mxu0 0.0
          %330 = vmatprep.subr.mxu0 0.0
          %331 = vmatpush1.msra.mxu0 0.0
          %332 = vmatprep.subr.mxu0 0.0
          %333 = vmatpush1.msra.mxu0 0.0
          %334 = vmatprep.subr.mxu0 0.0
          %335 = vmatpush1.msra.mxu0 0.0
          %336 = vmatprep.subr.mxu0 0.0
          %337 = vmatpush1.msra.mxu0 0.0
          %338 = vmatprep.subr.mxu0 0.0
          %339 = vmatpush1.msra.mxu0 0.0
          %340 = vmatprep.subr.mxu0 0.0
          %341 = vmatpush1.msra.mxu0 0.0
          %342 = vmatprep.subr.mxu0 0.0
          %343 = vmatpush1.msra.mxu0 0.0
          %344 = vmatprep.subr.mxu0 0.0
          %345 = vmatpush1.msra.mxu0 0.0
          %346 = vmatprep.subr.mxu0 0.0
          %347 = vmatpush1.msra.mxu0 0.0
          %348 = vmatprep.subr.mxu0 0.0
          %349 = vmatpush1.msra.mxu0 0.0
          %350 = vmatprep.subr.mxu0 0.0
          %351 = vmatpush1.msra.mxu0 0.0
          %352 = vmatprep.subr.mxu0 0.0
          %353 = vmatpush1.msra.mxu0 0.0
          %354 = vmatprep.subr.mxu0 0.0
          %355 = vmatpush1.msra.mxu0 0.0
          %356 = vmatprep.subr.mxu0 0.0
          %357 = vmatpush1.msra.mxu0 0.0
          %358 = vmatprep.subr.mxu0 0.0
          %359 = vmatpush1.msra.mxu0 0.0
          %360 = vmatprep.mubr.f32.mxu0 0.0
          %361 = vmatmul.mubr.f32.gmra.mrb[0].mxu0 %v294
          %v362 = vpop.f32.mrb[0].mxu0
          %v363 = vadd.f32 %v291, %v362
          %v364 = vpop.f32.mrb[0].mxu0
          %365 = vdwg.mxu0
          %366 = vst [vmem:[#allocation4] sm:$0x3] %v363
        $region81: #{tpu_custom_call.1} parent=68 // pred_fallthru
          _
        // Predicated region
        $region82: #{tpu_custom_call.1} parent=68 // pred_check
          %p367 = pneg %p115
        $region83: #{tpu_custom_call.1} parent=68 // pred_check_branch
          %369 = sbr.rel (%p367) target = $region85
        $region84: #{tpu_custom_call.1} parent=68 // pred_region
          %s371 = ssub.s32 32, 32
          %372 = vsyncadd [#allocation5], %s371
          %s373 = smul.addr %s19, 32
          %s374 = scalar_lea.hbm %s3, %s373
          %s376 = sshll.u32 [#allocation4], 4
          %s377 = int_to_ptr.vmem [resolvable:$true] %s376
          %379 = dma.vmem_to_hbm [thread:$0]  %s377, 32, %s374, [#allocation5]
        $region85: #{tpu_custom_call.1} parent=68 // pred_fallthru
          _
        // Predicated region
        $region86: #{tpu_custom_call.1} parent=68 // pred_check
          %p380 = pneg %p115
        $region87: #{tpu_custom_call.1} parent=68 // pred_check_branch
          %382 = sbr.rel (%p380) target = $region89
        $region88: #{tpu_custom_call.1} parent=68 // pred_region
          %383 = dma.done [#allocation5], 32
        $region89: #{tpu_custom_call.1} parent=68 // pred_fallthru
          _
      $region69: #{tpu_custom_call.1} parent=5 // pred_fallthru
        _
      %p384 = scmp.le.s32.totalorder 2, %s10
      // Predicated region
      $region90: #{tpu_custom_call.1} parent=5 // pred_check
        %p385 = pneg %p384
      $region91: #{tpu_custom_call.1} parent=5 // pred_check_branch
        %387 = sbr.rel (%p385) target = $region93
      $region92: #{tpu_custom_call.1} parent=5 // pred_region
        %s388 = ssub.s32 %s10, 2
      $region93: #{tpu_custom_call.1} parent=5 // pred_fallthru
        _
    $region6: #{tpu_custom_call.1} parent=1 // loop_footer
      %s14 = sadd.s32 1, %s10
    $region7: #{tpu_custom_call.1} parent=1 // loop_footer_branch
      %9 = sbr.rel target = $region3
    $region8: #{tpu_custom_call.1} parent=1 // loop_exit
      _
    %389 = vsyncpa [#allocation5], 1
    %s390 = scalar_lea.sflag [#allocation5], 1
    %391 = vsyncpa %s390, 1

</llo_original>
